<compile_context>
chip_gen: v7x
topology: tpu7x:2x2x1
jax: 0.10.0
libtpu: 0.0.40
codegen_flags: <defaults>
</compile_context>

<pallas_src>
import functools

import jax
import jax.numpy as jnp
from jax.experimental import pallas as pl
from jax.experimental.pallas import tpu as pltpu


def resblock_kernel(x_ref, wb1_ref, b1_ref, wb2_ref, b2_ref, o_ref,
                    xpad, ypad, *, NB, H, W, Cin, Cmid, Cout):
    """Fused ResBlock for NB batch elements per grid step.

    x_ref   : (NB, H, W*Cin)        input images, channels-last, W*C flattened (f32)
    wb1_ref : (3, W*Cin,  W*Cmid)   banded conv1 weights, one slab per dy (bf16)
    b1_ref  : (1, W*Cmid)           conv1 bias tiled over W (f32)
    wb2_ref : (3, W*Cmid, W*Cout)   banded conv2 weights (bf16)
    b2_ref  : (1, W*Cout)           conv2 bias tiled over W (f32)
    o_ref   : (NB, H, W*Cout)       output (f32)
    xpad    : VMEM (NB*(H+2), W*Cin)   stacked row-halo input scratch
    ypad    : VMEM (NB*(H+2), W*Cmid)  stacked row-halo conv1 activation scratch
    """
    HP = H + 2
    M = NB * HP - 2                       # rows fed to each row-slab matmul

    # ---- build the tall row-halo input slab --------------------------------
    # Only the per-image top/bottom halo rows need zeros; interior rows are
    # fully overwritten every step and there is no lane halo (it is folded
    # into the banded weights), so no full-scratch memset is needed.
    zx = jnp.zeros((1, W * Cin), dtype=xpad.dtype)
    for b in range(NB):
        xpad[b * HP:b * HP + 1, :] = zx
        xpad[b * HP + H + 1:b * HP + H + 2, :] = zx
        xpad[b * HP + 1:b * HP + 1 + H, :] = x_ref[b]

    # ---- conv1 + bias + ReLU: 3 lane-dense row-slab matmuls, f32 acc --------
    acc1 = jnp.broadcast_to(b1_ref[...], (M, W * Cmid)).astype(jnp.float32)
    for dy in range(3):
        a = xpad[dy:dy + M, :].astype(jnp.bfloat16)          # bf16 MXU operand
        acc1 = acc1 + jnp.dot(a, wb1_ref[dy],
                              preferred_element_type=jnp.float32)

    # Rows landing on the inter-image separators are garbage; zero them so
    # they act as the row halo for conv2.
    row = jax.lax.broadcasted_iota(jnp.int32, (M, 1), 0)
    valid = (row % HP) < H
    y = jnp.where(valid, jnp.maximum(acc1, 0.0), 0.0)

    zy = jnp.zeros((1, W * Cmid), dtype=ypad.dtype)
    ypad[0:1, :] = zy
    ypad[NB * HP - 1:NB * HP, :] = zy
    ypad[1:M + 1, :] = y

    # ---- conv2 + bias + residual add ----------------------------------------
    acc2 = jnp.broadcast_to(b2_ref[...], (M, W * Cout)).astype(jnp.float32)
    for dy in range(3):
        a = ypad[dy:dy + M, :].astype(jnp.bfloat16)          # bf16 MXU operand
        acc2 = acc2 + jnp.dot(a, wb2_ref[dy],
                              preferred_element_type=jnp.float32)

    # Re-read x_ref for the residual (not held live across the convs).
    for b in range(NB):
        o_ref[b] = (acc2[b * HP:b * HP + H, :] + x_ref[b]).astype(o_ref.dtype)


def _band_weight(w, W):
    """(3,3,Cin,Cout) -> (3, W*Cin, W*Cout) banded matrices (SAME padding in W).

    wb[dy, w_in*Cin + ci, w_out*Cout + co] = w[dy, w_in - w_out + 1, ci, co]
    if |w_in - w_out| <= 1 else 0, so the conv along W (padding=1) becomes one
    lane-dense matmul per dy with no lane halo needed in the input slab.
    """
    KH, KW, Cin, Cout = w.shape
    w_in = jnp.arange(W)
    w_out = jnp.arange(W)
    dx = jnp.arange(KW)
    sel = (w_in[None, :, None] ==
           (w_out[None, None, :] + dx[:, None, None] - 1)).astype(w.dtype)
    wb = jnp.einsum('dio,kdce->kicoe', sel, w)      # (KH, W, Cin, W, Cout)
    return wb.reshape(KH, W * Cin, W * Cout)


def _pick_nb(N, H, max_rows=512):
    """Largest divisor of N whose stacked slab height NB*(H+2) stays <= max_rows."""
    nb = 1
    for cand in range(1, N + 1):
        if N % cand == 0 and cand * (H + 2) <= max_rows:
            nb = cand
    return nb


def _const_spec(shape, index_map):
    """BlockSpec for a grid-invariant operand: single-buffer it to save VMEM."""
    try:
        return pl.BlockSpec(shape, index_map, pipeline_mode=pl.Buffered(1))
    except (TypeError, AttributeError):   # older jax without pipeline_mode
        return pl.BlockSpec(shape, index_map)


@jax.jit
def res_block(x_nchw, params):
    """Forward pass of ResBlock. x_nchw: (N, C, H, W) float32."""
    w1, b1, w2, b2 = params
    x = jnp.transpose(x_nchw, (0, 2, 3, 1))                 # NCHW -> NHWC
    N, H, W, Cin = x.shape
    Cmid = w1.shape[-1]
    Cout = w2.shape[-1]
    assert Cout == Cin, "residual add requires out_channels == in_channels"

    x_flat = x.reshape(N, H, W * Cin)                       # lane-dense slab
    wb1 = _band_weight(w1, W).astype(jnp.bfloat16)          # bf16 MXU operands
    wb2 = _band_weight(w2, W).astype(jnp.bfloat16)
    b1_t = jnp.tile(b1.reshape(1, Cmid), (1, W))            # (1, W*Cmid) f32
    b2_t = jnp.tile(b2.reshape(1, Cout), (1, W))            # (1, W*Cout) f32

    NB = _pick_nb(N, H)                                     # images per grid step
    HP = H + 2

    kernel = functools.partial(resblock_kernel, NB=NB, H=H, W=W,
                               Cin=Cin, Cmid=Cmid, Cout=Cout)
    out_flat = pl.pallas_call(
        kernel,
        out_shape=jax.ShapeDtypeStruct((N, H, W * Cout), jnp.float32),
        grid_spec=pltpu.PrefetchScalarGridSpec(
            num_scalar_prefetch=0,
            grid=(N // NB,),
            in_specs=[
                pl.BlockSpec((NB, H, W * Cin), lambda i: (i, 0, 0)),
                _const_spec(wb1.shape, lambda i: (0, 0, 0)),
                _const_spec(b1_t.shape, lambda i: (0, 0)),
                _const_spec(wb2.shape, lambda i: (0, 0, 0)),
                _const_spec(b2_t.shape, lambda i: (0, 0)),
            ],
            out_specs=pl.BlockSpec((NB, H, W * Cout), lambda i: (i, 0, 0)),
            scratch_shapes=[
                pltpu.VMEM((NB * HP, W * Cin), jnp.float32),
                pltpu.VMEM((NB * HP, W * Cmid), jnp.float32),
            ],
        ),
        compiler_params=pltpu.CompilerParams(
            dimension_semantics=("parallel",),
            vmem_limit_bytes=48 * 1024 * 1024,   # explicit budget (v7x: 64 MiB phys)
        ),
    )(x_flat, wb1, b1_t, wb2, b2_t)

    out = out_flat.reshape(N, H, W, Cout)
    return jnp.transpose(out, (0, 3, 1, 2))                 # NHWC -> NCHW


def init_params(key, in_channels, mid_channels, out_channels):
    k1, k2, k3, k4 = jax.random.split(key, 4)
    # Deterministic synthetic init (roughly Kaiming-uniform scale like nn.Conv2d).
    s1 = 1.0 / (3 * 3 * in_channels) ** 0.5
    s2 = 1.0 / (3 * 3 * mid_channels) ** 0.5
    w1 = jax.random.uniform(k1, (3, 3, in_channels, mid_channels),
                            jnp.float32, -s1, s1)
    b1 = jax.random.uniform(k2, (1, mid_channels), jnp.float32, -s1, s1)
    w2 = jax.random.uniform(k3, (3, 3, mid_channels, out_channels),
                            jnp.float32, -s2, s2)
    b2 = jax.random.uniform(k4, (1, out_channels), jnp.float32, -s2, s2)
    return w1, b1, w2, b2


if __name__ == "__main__":
    key = jax.random.PRNGKey(0)
    kx, kp = jax.random.split(key)

    # W*C = 128 so the input/output slabs are exactly one lane-width (unmasked stores).
    N, C, H, W = 2, 8, 16, 16
    mid_channels = 8
    params = init_params(kp, C, mid_channels, C)   # residual requires Cout == Cin
    x = jax.random.normal(kx, (N, C, H, W), jnp.float32)

    out = res_block(x, params)
    jax.block_until_ready(out)

    # Cross-check against XLA's conv (bf16 matmul operands => looser tolerance).
    w1, b1, w2, b2 = params
    x_nhwc = jnp.transpose(x, (0, 2, 3, 1))
    dn = ("NHWC", "HWIO", "NHWC")
    ref1 = jax.lax.conv_general_dilated(x_nhwc, w1, (1, 1), "SAME",
                                        dimension_numbers=dn) + b1[0]
    ref1 = jnp.maximum(ref1, 0.0)
    ref2 = jax.lax.conv_general_dilated(ref1, w2, (1, 1), "SAME",
                                        dimension_numbers=dn) + b2[0]
    ref = jnp.transpose(ref2 + x_nhwc, (0, 3, 1, 2))
    assert out.shape == (N, C, H, W)
    max_err = jnp.max(jnp.abs(out - ref))
    assert jnp.allclose(out, ref, atol=5e-2, rtol=5e-2), f"max abs err {max_err}"

    print("KERNEL_OK")
</pallas_src>

<mosaic_0001>
module attributes {stable_mosaic.version = 11 : i64} {
  func.func @resblock_kernel(%arg0: i32, %arg1: memref<2x16x128xf32, #tpu.memory_space<vmem>>, %arg2: memref<3x128x128xbf16, #tpu.memory_space<vmem>>, %arg3: memref<1x128xf32, #tpu.memory_space<vmem>>, %arg4: memref<3x128x128xbf16, #tpu.memory_space<vmem>>, %arg5: memref<1x128xf32, #tpu.memory_space<vmem>>, %arg6: memref<2x16x128xf32, #tpu.memory_space<vmem>>, %arg7: memref<36x128xf32, #tpu.memory_space<vmem>>, %arg8: memref<36x128xf32, #tpu.memory_space<vmem>>) attributes {dimension_semantics = [#tpu.dimension_semantics<parallel>], iteration_bounds = array<i64: 1>, scalar_prefetch = 0 : i64, scratch_operands = 2 : i64, tpu.core_type = #tpu.core_type<tc>, window_params = [{transform_indices = @transform_0, window_bounds = array<i64: 2, 16, 128>}, {pipeline_mode = #tpu.pipeline_mode<synchronous>, transform_indices = @transform_1, window_bounds = array<i64: 3, 128, 128>}, {pipeline_mode = #tpu.pipeline_mode<synchronous>, transform_indices = @transform_2, window_bounds = array<i64: 1, 128>}, {pipeline_mode = #tpu.pipeline_mode<synchronous>, transform_indices = @transform_3, window_bounds = array<i64: 3, 128, 128>}, {pipeline_mode = #tpu.pipeline_mode<synchronous>, transform_indices = @transform_4, window_bounds = array<i64: 1, 128>}, {transform_indices = @transform_5, window_bounds = array<i64: 2, 16, 128>}]} {
    %cst = arith.constant 0.000000e+00 : f32
    %0 = vector.broadcast %cst : f32 to vector<1x128xf32>
    %c0 = arith.constant 0 : index
    %c0_0 = arith.constant 0 : index
    %1 = vector.load %arg7[%c0, %c0_0] : memref<36x128xf32, #tpu.memory_space<vmem>>, vector<1x128xf32>
    tpu.vector_store %arg7[%c0, %c0_0], %0 {strides = array<i32>} : memref<36x128xf32, #tpu.memory_space<vmem>>, vector<1x128xf32>,
    %c17 = arith.constant 17 : index
    %c0_1 = arith.constant 0 : index
    %2 = vector.load %arg7[%c17, %c0_1] : memref<36x128xf32, #tpu.memory_space<vmem>>, vector<1x128xf32>
    tpu.vector_store %arg7[%c17, %c0_1], %0 {strides = array<i32>} : memref<36x128xf32, #tpu.memory_space<vmem>>, vector<1x128xf32>,
    %c0_2 = arith.constant 0 : index
    %c0_3 = arith.constant 0 : index
    %c0_4 = arith.constant 0 : index
    %3 = vector.load %arg1[%c0_2, %c0_3, %c0_4] : memref<2x16x128xf32, #tpu.memory_space<vmem>>, vector<1x16x128xf32>
    %4 = vector.shape_cast %3 : vector<1x16x128xf32> to vector<16x128xf32>
    %c1 = arith.constant 1 : index
    %c0_5 = arith.constant 0 : index
    %5 = vector.load %arg7[%c1, %c0_5] : memref<36x128xf32, #tpu.memory_space<vmem>>, vector<16x128xf32>
    tpu.vector_store %arg7[%c1, %c0_5], %4 {strides = array<i32>} : memref<36x128xf32, #tpu.memory_space<vmem>>, vector<16x128xf32>,
    %c18 = arith.constant 18 : index
    %c0_6 = arith.constant 0 : index
    %6 = vector.load %arg7[%c18, %c0_6] : memref<36x128xf32, #tpu.memory_space<vmem>>, vector<1x128xf32>
    tpu.vector_store %arg7[%c18, %c0_6], %0 {strides = array<i32>} : memref<36x128xf32, #tpu.memory_space<vmem>>, vector<1x128xf32>,
    %c35 = arith.constant 35 : index
    %c0_7 = arith.constant 0 : index
    %7 = vector.load %arg7[%c35, %c0_7] : memref<36x128xf32, #tpu.memory_space<vmem>>, vector<1x128xf32>
    tpu.vector_store %arg7[%c35, %c0_7], %0 {strides = array<i32>} : memref<36x128xf32, #tpu.memory_space<vmem>>, vector<1x128xf32>,
    %c1_8 = arith.constant 1 : index
    %c0_9 = arith.constant 0 : index
    %c0_10 = arith.constant 0 : index
    %8 = vector.load %arg1[%c1_8, %c0_9, %c0_10] : memref<2x16x128xf32, #tpu.memory_space<vmem>>, vector<1x16x128xf32>
    %9 = vector.shape_cast %8 : vector<1x16x128xf32> to vector<16x128xf32>
    %c19 = arith.constant 19 : index
    %c0_11 = arith.constant 0 : index
    %10 = vector.load %arg7[%c19, %c0_11] : memref<36x128xf32, #tpu.memory_space<vmem>>, vector<16x128xf32>
    tpu.vector_store %arg7[%c19, %c0_11], %9 {strides = array<i32>} : memref<36x128xf32, #tpu.memory_space<vmem>>, vector<16x128xf32>,
    %c0_12 = arith.constant 0 : index
    %c0_13 = arith.constant 0 : index
    %11 = vector.load %arg3[%c0_12, %c0_13] : memref<1x128xf32, #tpu.memory_space<vmem>>, vector<1x128xf32>
    %12 = vector.shape_cast %11 : vector<1x128xf32> to vector<1x128xf32>
    %13 = vector.broadcast %12 : vector<1x128xf32> to vector<34x128xf32>
    %c0_14 = arith.constant 0 : index
    %c0_15 = arith.constant 0 : index
    %14 = vector.load %arg7[%c0_14, %c0_15] : memref<36x128xf32, #tpu.memory_space<vmem>>, vector<34x128xf32>
    %15 = arith.truncf %14 : vector<34x128xf32> to vector<34x128xbf16>
    %c0_16 = arith.constant 0 : index
    %c0_17 = arith.constant 0 : index
    %c0_18 = arith.constant 0 : index
    %16 = vector.load %arg2[%c0_16, %c0_17, %c0_18] : memref<3x128x128xbf16, #tpu.memory_space<vmem>>, vector<1x128x128xbf16>
    %17 = vector.shape_cast %16 : vector<1x128x128xbf16> to vector<128x128xbf16>
    %cst_19 = arith.constant dense<0.000000e+00> : vector<34x128xf32>
    %18 = tpu.matmul %15, %17, %cst_19 {dimension_numbers = #tpu.dot_dimension_numbers<[1], [0], [0], [1], [0, 0, 1, 1], [], []>} : vector<34x128xbf16>, vector<128x128xbf16>, vector<34x128xf32> -> vector<34x128xf32>
    %19 = arith.addf %13, %18 : vector<34x128xf32>
    %c1_20 = arith.constant 1 : index
    %c0_21 = arith.constant 0 : index
    %20 = vector.load %arg7[%c1_20, %c0_21] : memref<36x128xf32, #tpu.memory_space<vmem>>, vector<34x128xf32>
    %21 = arith.truncf %20 : vector<34x128xf32> to vector<34x128xbf16>
    %c1_22 = arith.constant 1 : index
    %c0_23 = arith.constant 0 : index
    %c0_24 = arith.constant 0 : index
    %22 = vector.load %arg2[%c1_22, %c0_23, %c0_24] : memref<3x128x128xbf16, #tpu.memory_space<vmem>>, vector<1x128x128xbf16>
    %23 = vector.shape_cast %22 : vector<1x128x128xbf16> to vector<128x128xbf16>
    %cst_25 = arith.constant dense<0.000000e+00> : vector<34x128xf32>
    %24 = tpu.matmul %21, %23, %cst_25 {dimension_numbers = #tpu.dot_dimension_numbers<[1], [0], [0], [1], [0, 0, 1, 1], [], []>} : vector<34x128xbf16>, vector<128x128xbf16>, vector<34x128xf32> -> vector<34x128xf32>
    %25 = arith.addf %19, %24 : vector<34x128xf32>
    %c2 = arith.constant 2 : index
    %c0_26 = arith.constant 0 : index
    %26 = vector.load %arg7[%c2, %c0_26] : memref<36x128xf32, #tpu.memory_space<vmem>>, vector<34x128xf32>
    %27 = arith.truncf %26 : vector<34x128xf32> to vector<34x128xbf16>
    %c2_27 = arith.constant 2 : index
    %c0_28 = arith.constant 0 : index
    %c0_29 = arith.constant 0 : index
    %28 = vector.load %arg2[%c2_27, %c0_28, %c0_29] : memref<3x128x128xbf16, #tpu.memory_space<vmem>>, vector<1x128x128xbf16>
    %29 = vector.shape_cast %28 : vector<1x128x128xbf16> to vector<128x128xbf16>
    %cst_30 = arith.constant dense<0.000000e+00> : vector<34x128xf32>
    %30 = tpu.matmul %27, %29, %cst_30 {dimension_numbers = #tpu.dot_dimension_numbers<[1], [0], [0], [1], [0, 0, 1, 1], [], []>} : vector<34x128xbf16>, vector<128x128xbf16>, vector<34x128xf32> -> vector<34x128xf32>
    %31 = arith.addf %25, %30 : vector<34x128xf32>
    %32 = tpu.iota {dimensions = array<i32: 0>} : vector<34x1xi32>
    %c18_i32 = arith.constant 18 : i32
    %c0_i32 = arith.constant 0 : i32
    %33 = arith.cmpi eq, %c18_i32, %c0_i32 : i32
    %c1_i32 = arith.constant 1 : i32
    %34 = arith.select %33, %c1_i32, %c18_i32 : i32
    %35 = vector.broadcast %34 : i32 to vector<34x1xi32>
    %36 = arith.remsi %32, %35 : vector<34x1xi32>
    %c0_i32_31 = arith.constant 0 : i32
    %37 = vector.broadcast %c0_i32_31 : i32 to vector<34x1xi32>
    %38 = arith.cmpi ne, %36, %37 : vector<34x1xi32>
    %c0_i32_32 = arith.constant 0 : i32
    %39 = vector.broadcast %c0_i32_32 : i32 to vector<34x1xi32>
    %40 = arith.cmpi slt, %36, %39 : vector<34x1xi32>
    %c0_i32_33 = arith.constant 0 : i32
    %41 = arith.cmpi slt, %34, %c0_i32_33 : i32
    %42 = vector.broadcast %41 : i1 to vector<34x1xi1>
    %43 = vector.broadcast %42 : vector<34x1xi1> to vector<34x1xi1>
    %44 = arith.xori %40, %43 : vector<34x1xi1>
    %45 = arith.andi %44, %38 : vector<34x1xi1>
    %46 = vector.broadcast %34 : i32 to vector<34x1xi32>
    %47 = arith.addi %36, %46 : vector<34x1xi32>
    %48 = arith.select %45, %47, %36 : vector<34x1xi1>, vector<34x1xi32>
    %c16_i32 = arith.constant 16 : i32
    %49 = vector.broadcast %c16_i32 : i32 to vector<34x1xi32>
    %50 = arith.cmpi slt, %48, %49 : vector<34x1xi32>
    %cst_34 = arith.constant 0.000000e+00 : f32
    %51 = vector.broadcast %cst_34 : f32 to vector<34x128xf32>
    %52 = arith.maximumf %31, %51 : vector<34x128xf32>
    %cst_35 = arith.constant 0.000000e+00 : f32
    %53 = vector.shape_cast %50 : vector<34x1xi1> to vector<34x1xi1>
    %54 = vector.broadcast %53 : vector<34x1xi1> to vector<34x128xi1>
    %55 = vector.broadcast %cst_35 : f32 to vector<34x128xf32>
    %56 = arith.select %54, %52, %55 : vector<34x128xi1>, vector<34x128xf32>
    %cst_36 = arith.constant 0.000000e+00 : f32
    %57 = vector.broadcast %cst_36 : f32 to vector<1x128xf32>
    %c0_37 = arith.constant 0 : index
    %c0_38 = arith.constant 0 : index
    %58 = vector.load %arg8[%c0_37, %c0_38] : memref<36x128xf32, #tpu.memory_space<vmem>>, vector<1x128xf32>
    tpu.vector_store %arg8[%c0_37, %c0_38], %57 {strides = array<i32>} : memref<36x128xf32, #tpu.memory_space<vmem>>, vector<1x128xf32>,
    %c35_39 = arith.constant 35 : index
    %c0_40 = arith.constant 0 : index
    %59 = vector.load %arg8[%c35_39, %c0_40] : memref<36x128xf32, #tpu.memory_space<vmem>>, vector<1x128xf32>
    tpu.vector_store %arg8[%c35_39, %c0_40], %57 {strides = array<i32>} : memref<36x128xf32, #tpu.memory_space<vmem>>, vector<1x128xf32>,
    %c1_41 = arith.constant 1 : index
    %c0_42 = arith.constant 0 : index
    %60 = vector.load %arg8[%c1_41, %c0_42] : memref<36x128xf32, #tpu.memory_space<vmem>>, vector<34x128xf32>
    tpu.vector_store %arg8[%c1_41, %c0_42], %56 {strides = array<i32>} : memref<36x128xf32, #tpu.memory_space<vmem>>, vector<34x128xf32>,
    %c0_43 = arith.constant 0 : index
    %c0_44 = arith.constant 0 : index
    %61 = vector.load %arg5[%c0_43, %c0_44] : memref<1x128xf32, #tpu.memory_space<vmem>>, vector<1x128xf32>
    %62 = vector.shape_cast %61 : vector<1x128xf32> to vector<1x128xf32>
    %63 = vector.broadcast %62 : vector<1x128xf32> to vector<34x128xf32>
    %c0_45 = arith.constant 0 : index
    %c0_46 = arith.constant 0 : index
    %64 = vector.load %arg8[%c0_45, %c0_46] : memref<36x128xf32, #tpu.memory_space<vmem>>, vector<34x128xf32>
    %65 = arith.truncf %64 : vector<34x128xf32> to vector<34x128xbf16>
    %c0_47 = arith.constant 0 : index
    %c0_48 = arith.constant 0 : index
    %c0_49 = arith.constant 0 : index
    %66 = vector.load %arg4[%c0_47, %c0_48, %c0_49] : memref<3x128x128xbf16, #tpu.memory_space<vmem>>, vector<1x128x128xbf16>
    %67 = vector.shape_cast %66 : vector<1x128x128xbf16> to vector<128x128xbf16>
    %cst_50 = arith.constant dense<0.000000e+00> : vector<34x128xf32>
    %68 = tpu.matmul %65, %67, %cst_50 {dimension_numbers = #tpu.dot_dimension_numbers<[1], [0], [0], [1], [0, 0, 1, 1], [], []>} : vector<34x128xbf16>, vector<128x128xbf16>, vector<34x128xf32> -> vector<34x128xf32>
    %69 = arith.addf %63, %68 : vector<34x128xf32>
    %c1_51 = arith.constant 1 : index
    %c0_52 = arith.constant 0 : index
    %70 = vector.load %arg8[%c1_51, %c0_52] : memref<36x128xf32, #tpu.memory_space<vmem>>, vector<34x128xf32>
    %71 = arith.truncf %70 : vector<34x128xf32> to vector<34x128xbf16>
    %c1_53 = arith.constant 1 : index
    %c0_54 = arith.constant 0 : index
    %c0_55 = arith.constant 0 : index
    %72 = vector.load %arg4[%c1_53, %c0_54, %c0_55] : memref<3x128x128xbf16, #tpu.memory_space<vmem>>, vector<1x128x128xbf16>
    %73 = vector.shape_cast %72 : vector<1x128x128xbf16> to vector<128x128xbf16>
    %cst_56 = arith.constant dense<0.000000e+00> : vector<34x128xf32>
    %74 = tpu.matmul %71, %73, %cst_56 {dimension_numbers = #tpu.dot_dimension_numbers<[1], [0], [0], [1], [0, 0, 1, 1], [], []>} : vector<34x128xbf16>, vector<128x128xbf16>, vector<34x128xf32> -> vector<34x128xf32>
    %75 = arith.addf %69, %74 : vector<34x128xf32>
    %c2_57 = arith.constant 2 : index
    %c0_58 = arith.constant 0 : index
    %76 = vector.load %arg8[%c2_57, %c0_58] : memref<36x128xf32, #tpu.memory_space<vmem>>, vector<34x128xf32>
    %77 = arith.truncf %76 : vector<34x128xf32> to vector<34x128xbf16>
    %c2_59 = arith.constant 2 : index
    %c0_60 = arith.constant 0 : index
    %c0_61 = arith.constant 0 : index
    %78 = vector.load %arg4[%c2_59, %c0_60, %c0_61] : memref<3x128x128xbf16, #tpu.memory_space<vmem>>, vector<1x128x128xbf16>
    %79 = vector.shape_cast %78 : vector<1x128x128xbf16> to vector<128x128xbf16>
    %cst_62 = arith.constant dense<0.000000e+00> : vector<34x128xf32>
    %80 = tpu.matmul %77, %79, %cst_62 {dimension_numbers = #tpu.dot_dimension_numbers<[1], [0], [0], [1], [0, 0, 1, 1], [], []>} : vector<34x128xbf16>, vector<128x128xbf16>, vector<34x128xf32> -> vector<34x128xf32>
    %81 = arith.addf %75, %80 : vector<34x128xf32>
    %82 = vector.extract_strided_slice %81 {offsets = [0, 0], sizes = [16, 128], strides = [1, 1]} : vector<34x128xf32> to vector<16x128xf32>
    %c0_63 = arith.constant 0 : index
    %c0_64 = arith.constant 0 : index
    %c0_65 = arith.constant 0 : index
    %83 = vector.load %arg1[%c0_63, %c0_64, %c0_65] : memref<2x16x128xf32, #tpu.memory_space<vmem>>, vector<1x16x128xf32>
    %84 = vector.shape_cast %83 : vector<1x16x128xf32> to vector<16x128xf32>
    %85 = arith.addf %82, %84 : vector<16x128xf32>
    %c0_66 = arith.constant 0 : index
    %c0_67 = arith.constant 0 : index
    %c0_68 = arith.constant 0 : index
    %86 = vector.load %arg6[%c0_66, %c0_67, %c0_68] : memref<2x16x128xf32, #tpu.memory_space<vmem>>, vector<1x16x128xf32>
    %87 = vector.shape_cast %86 : vector<1x16x128xf32> to vector<16x128xf32>
    %88 = vector.shape_cast %85 : vector<16x128xf32> to vector<1x16x128xf32>
    tpu.vector_store %arg6[%c0_66, %c0_67, %c0_68], %88 {strides = array<i32>} : memref<2x16x128xf32, #tpu.memory_space<vmem>>, vector<1x16x128xf32>,
    %89 = vector.extract_strided_slice %81 {offsets = [18, 0], sizes = [16, 128], strides = [1, 1]} : vector<34x128xf32> to vector<16x128xf32>
    %c1_69 = arith.constant 1 : index
    %c0_70 = arith.constant 0 : index
    %c0_71 = arith.constant 0 : index
    %90 = vector.load %arg1[%c1_69, %c0_70, %c0_71] : memref<2x16x128xf32, #tpu.memory_space<vmem>>, vector<1x16x128xf32>
    %91 = vector.shape_cast %90 : vector<1x16x128xf32> to vector<16x128xf32>
    %92 = arith.addf %89, %91 : vector<16x128xf32>
    %c1_72 = arith.constant 1 : index
    %c0_73 = arith.constant 0 : index
    %c0_74 = arith.constant 0 : index
    %93 = vector.load %arg6[%c1_72, %c0_73, %c0_74] : memref<2x16x128xf32, #tpu.memory_space<vmem>>, vector<1x16x128xf32>
    %94 = vector.shape_cast %93 : vector<1x16x128xf32> to vector<16x128xf32>
    %95 = vector.shape_cast %92 : vector<16x128xf32> to vector<1x16x128xf32>
    tpu.vector_store %arg6[%c1_72, %c0_73, %c0_74], %95 {strides = array<i32>} : memref<2x16x128xf32, #tpu.memory_space<vmem>>, vector<1x16x128xf32>,
    return
  }
  func.func @transform_0(%arg0: i32) -> (i32, i32, i32) {
    %c0_i32 = arith.constant 0 : i32
    %c0_i32_0 = arith.constant 0 : i32
    %c0_i32_1 = arith.constant 0 : i32
    return %arg0, %c0_i32, %c0_i32_0 : i32, i32, i32
  }
  func.func @transform_1(%arg0: i32) -> (i32, i32, i32) {
    %c0_i32 = arith.constant 0 : i32
    %c0_i32_0 = arith.constant 0 : i32
    %c0_i32_1 = arith.constant 0 : i32
    %c0_i32_2 = arith.constant 0 : i32
    return %c0_i32, %c0_i32_0, %c0_i32_1 : i32, i32, i32
  }
  func.func @transform_2(%arg0: i32) -> (i32, i32) {
    %c0_i32 = arith.constant 0 : i32
    %c0_i32_0 = arith.constant 0 : i32
    %c0_i32_1 = arith.constant 0 : i32
    return %c0_i32, %c0_i32_0 : i32, i32
  }
  func.func @transform_3(%arg0: i32) -> (i32, i32, i32) {
    %c0_i32 = arith.constant 0 : i32
    %c0_i32_0 = arith.constant 0 : i32
    %c0_i32_1 = arith.constant 0 : i32
    %c0_i32_2 = arith.constant 0 : i32
    return %c0_i32, %c0_i32_0, %c0_i32_1 : i32, i32, i32
  }
  func.func @transform_4(%arg0: i32) -> (i32, i32) {
    %c0_i32 = arith.constant 0 : i32
    %c0_i32_0 = arith.constant 0 : i32
    %c0_i32_1 = arith.constant 0 : i32
    return %c0_i32, %c0_i32_0 : i32, i32
  }
  func.func @transform_5(%arg0: i32) -> (i32, i32, i32) {
    %c0_i32 = arith.constant 0 : i32
    %c0_i32_0 = arith.constant 0 : i32
    %c0_i32_1 = arith.constant 0 : i32
    return %arg0, %c0_i32, %c0_i32_0 : i32, i32, i32
  }
}

</mosaic_0001>

<llo_original>
// kernel: res_block.1
$region0: #{res_block.1}
  #allocation0 [shape = 'u32[]', space=smem, size = 0x4, offset = 0x4, fixed_abs, tag = 'smem constant byte address 0x4 - core index']
  #allocation1 [shape = 'u32[144,128]{1,0:T(1,128)}', space=vmem, size = 0x12000, scoped, tag = 'internal scratch']
  #allocation2 [shape = 'f32[36,128]{1,0:T(8,128)}', space=vmem, size = 0x5000, scoped, tag = 'scratch operand']
  #allocation3 [shape = 'f32[36,128]{1,0:T(8,128)}', space=vmem, size = 0x5000, scoped, tag = 'scratch operand']
  %s0 = inlined_call_operand.vmem [shape: f32[2,16,128], index: 0, kind: input, shape index: {}]
  %s1 = inlined_call_operand.vmem [shape: bf16[3,128,128], index: 1, kind: input, shape index: {}]
  %s2 = inlined_call_operand.vmem [shape: f32[1,128], index: 2, kind: input, shape index: {}]
  %s3 = inlined_call_operand.vmem [shape: bf16[3,128,128], index: 3, kind: input, shape index: {}]
  %s4 = inlined_call_operand.vmem [shape: f32[1,128], index: 4, kind: input, shape index: {}]
  %s5 = inlined_call_operand.vmem [shape: f32[2,16,128], index: 5, kind: output, shape index: {}]
  %s6 = sld [smem:[#allocation0]]
  $region30: #{res_block.1} parent=0
    _
  %s8 = ssub.s32 1, %s6
  %s9 = scalar_select 0, %s8, %s6
  // Predicated region
  $region2: #{res_block.1} parent=0 // pred_check
    _
  $region3: #{res_block.1} parent=0 // pred_check_branch
    %11 = sbr.rel (0) target = $region5
  $region4: #{res_block.1} parent=0 // pred_region
    _
  $region5: #{res_block.1} parent=0 // pred_fallthru
    _
  // Predicated region
  $region6: #{res_block.1} parent=0 // pred_check
    _
  $region7: #{res_block.1} parent=0 // pred_check_branch
    %13 = sbr.rel (0) target = $region9
  $region8: #{res_block.1} parent=0 // pred_region
    _
  $region9: #{res_block.1} parent=0 // pred_fallthru
    _
  // Predicated region
  $region10: #{res_block.1} parent=0 // pred_check
    _
  $region11: #{res_block.1} parent=0 // pred_check_branch
    %15 = sbr.rel (0) target = $region13
  $region12: #{res_block.1} parent=0 // pred_region
    _
  $region13: #{res_block.1} parent=0 // pred_fallthru
    _
  // Predicated region
  $region14: #{res_block.1} parent=0 // pred_check
    _
  $region15: #{res_block.1} parent=0 // pred_check_branch
    %17 = sbr.rel (0) target = $region17
  $region16: #{res_block.1} parent=0 // pred_region
    _
  $region17: #{res_block.1} parent=0 // pred_fallthru
    _
  // Predicated region
  $region18: #{res_block.1} parent=0 // pred_check
    _
  $region19: #{res_block.1} parent=0 // pred_check_branch
    %19 = sbr.rel (0) target = $region21
  $region20: #{res_block.1} parent=0 // pred_region
    _
  $region21: #{res_block.1} parent=0 // pred_fallthru
    _
  %21 = vst [vmem:[#allocation2] sm:$0x1] 0.0
  %22 = vst [vmem:[#allocation2 + $0x11] sm:$0x1] 0.0
  %v23 = vld [vmem:[%s0] sm:$0xff]
  %v24 = vld [vmem:[%s0 + $0x8] sm:$0xff]
  %25 = vst [vmem:[#allocation2 + $0x1] sm:$0xff] %v23
  %26 = vst [vmem:[#allocation2 + $0x9] sm:$0xff] %v24
  %27 = vst [vmem:[#allocation2 + $0x12] sm:$0x1] 0.0
  %28 = vst [vmem:[#allocation2 + $0x23] sm:$0x1] 0.0
  %s29 = scalar_lea.vmem %s0, 16
  %v30 = vld [vmem:[%s29] sm:$0xff]
  %v31 = vld [vmem:[%s29 + $0x8] sm:$0xff]
  %32 = vst [vmem:[#allocation2 + $0x13] sm:$0xff] %v30
  %33 = vst [vmem:[#allocation2 + $0x1b] sm:$0xff] %v31
  %v34 = vld [vmem:[%s2] sm:$0x1]
  %v36 = vlaneseq
  %v37 = vshrl.u32 %v36, 7
  %v38 = vsub.s32 0, %v37
  %v39 = vrot.slane %v34, %v38
  %v41 = vld [vmem:[#allocation2] sm:$0xff]
  %v42 = vld [vmem:[#allocation2 + $0x8] sm:$0xff]
  %v43 = vld [vmem:[#allocation2 + $0x10] sm:$0xff]
  %v44 = vld [vmem:[#allocation2 + $0x18] sm:$0xff]
  %v45 = vld [vmem:[#allocation2 + $0x20] sm:$0x3]
  %v46 = vpack.c.bf16 %v42, %v41
  %v47 = vpack.c.bf16 %v44, %v43
  %v48 = vpack.c.bf16 %v45, %v45
  %v49 = vld [vmem:[%s1] sm:$0xf]
  %v50 = vld [vmem:[%s1 + $0x4] sm:$0xf]
  %v51 = vld [vmem:[%s1 + $0x8] sm:$0xf]
  %v52 = vld [vmem:[%s1 + $0xc] sm:$0xf]
  %v53 = vld [vmem:[%s1 + $0x10] sm:$0xf]
  %v54 = vld [vmem:[%s1 + $0x14] sm:$0xf]
  %v55 = vld [vmem:[%s1 + $0x18] sm:$0xf]
  %v56 = vld [vmem:[%s1 + $0x1c] sm:$0xf]
  %v57 = vld [vmem:[%s1 + $0x20] sm:$0xf]
  %v58 = vld [vmem:[%s1 + $0x24] sm:$0xf]
  %v59 = vld [vmem:[%s1 + $0x28] sm:$0xf]
  %v60 = vld [vmem:[%s1 + $0x2c] sm:$0xf]
  %v61 = vld [vmem:[%s1 + $0x30] sm:$0xf]
  %v62 = vld [vmem:[%s1 + $0x34] sm:$0xf]
  %v63 = vld [vmem:[%s1 + $0x38] sm:$0xf]
  %v64 = vld [vmem:[%s1 + $0x3c] sm:$0xf]
  %v81 = vunpack.c.l.b16 %v49
  %v82 = vunpack.c.l.b16 %v50
  %v83 = vunpack.c.l.b16 %v51
  %v84 = vunpack.c.l.b16 %v52
  %v85 = vunpack.c.l.b16 %v53
  %v86 = vunpack.c.l.b16 %v54
  %v87 = vunpack.c.l.b16 %v55
  %v88 = vunpack.c.l.b16 %v56
  %v89 = vunpack.c.l.b16 %v57
  %v90 = vunpack.c.l.b16 %v58
  %v91 = vunpack.c.l.b16 %v59
  %v92 = vunpack.c.l.b16 %v60
  %v93 = vunpack.c.l.b16 %v61
  %v94 = vunpack.c.l.b16 %v62
  %v95 = vunpack.c.l.b16 %v63
  %v96 = vunpack.c.l.b16 %v64
  %v97 = vpack.c.b16 %v82, %v81
  %v98 = vpack.c.b16 %v84, %v83
  %v99 = vpack.c.b16 %v86, %v85
  %v100 = vpack.c.b16 %v88, %v87
  %v101 = vpack.c.b16 %v90, %v89
  %v102 = vpack.c.b16 %v92, %v91
  %v103 = vpack.c.b16 %v94, %v93
  %v104 = vpack.c.b16 %v96, %v95
  %113 = vmatprep.subr.bf16.mxu0 0
  %114 = vmatpush1.bf16.msra.mxu0 %v97
  %115 = vmatprep.subr.bf16.mxu0 0
  %116 = vmatpush1.bf16.msra.mxu0 %v98
  %117 = vmatprep.subr.bf16.mxu0 0
  %118 = vmatpush1.bf16.msra.mxu0 %v99
  %119 = vmatprep.subr.bf16.mxu0 0
  %120 = vmatpush1.bf16.msra.mxu0 %v100
  %121 = vmatprep.subr.bf16.mxu0 0
  %122 = vmatpush1.bf16.msra.mxu0 %v101
  %123 = vmatprep.subr.bf16.mxu0 0
  %124 = vmatpush1.bf16.msra.mxu0 %v102
  %125 = vmatprep.subr.bf16.mxu0 0
  %126 = vmatpush1.bf16.msra.mxu0 %v103
  %127 = vmatprep.subr.bf16.mxu0 0
  %128 = vmatpush1.bf16.msra.mxu0 %v104
  %129 = vmatprep.subr.bf16.mxu0 0
  %130 = vmatpush1.bf16.msra.mxu0 0
  %131 = vmatprep.subr.bf16.mxu0 0
  %132 = vmatpush1.bf16.msra.mxu0 0
  %133 = vmatprep.subr.bf16.mxu0 0
  %134 = vmatpush1.bf16.msra.mxu0 0
  %135 = vmatprep.subr.bf16.mxu0 0
  %136 = vmatpush1.bf16.msra.mxu0 0
  %137 = vmatprep.subr.bf16.mxu0 0
  %138 = vmatpush1.bf16.msra.mxu0 0
  %139 = vmatprep.subr.bf16.mxu0 0
  %140 = vmatpush1.bf16.msra.mxu0 0
  %141 = vmatprep.subr.bf16.mxu0 0
  %142 = vmatpush1.bf16.msra.mxu0 0
  %143 = vmatprep.subr.bf16.mxu0 0
  %144 = vmatpush1.bf16.msra.mxu0 0
  %145 = vmatprep.mubr.bf16.mxu0 0
  %146 = vmatmul.mubr.bf16.gmra.mrb[0].mxu0 %v46
  %v147 = vpop.f32.mrb[0].mxu0
  %v148 = vadd.f32 0.0, %v147
  %v149 = vpop.f32.mrb[0].mxu0
  %v150 = vpop.f32.mrb[0].mxu0
  %v151 = vadd.f32 0.0, %v150
  %v152 = vpop.f32.mrb[0].mxu0
  %153 = vmatprep.mubr.bf16.mxu0 0
  %154 = vmatmul.mubr.bf16.gmra.mrb[0].mxu0 %v47
  %v155 = vpop.f32.mrb[0].mxu0
  %v156 = vadd.f32 0.0, %v155
  %v157 = vpop.f32.mrb[0].mxu0
  %v158 = vpop.f32.mrb[0].mxu0
  %v159 = vadd.f32 0.0, %v158
  %v160 = vpop.f32.mrb[0].mxu0
  %161 = vmatprep.mubr.bf16.mxu0 0
  %162 = vmatmul.mubr.bf16.gmra.mrb[0].mxu0 %v48
  %v163 = vpop.f32.mrb[0].mxu0
  %v164 = vadd.f32 0.0, %v163
  %v165 = vpop.f32.mrb[0].mxu0
  %v166 = vpop.f32.mrb[0].mxu0
  %v167 = vpop.f32.mrb[0].mxu0
  %168 = vdwg.mxu0
  %v169 = vadd.f32 %v39, %v148
  %v170 = vadd.f32 %v39, %v151
  %v171 = vadd.f32 %v39, %v156
  %v172 = vadd.f32 %v39, %v159
  %v173 = vadd.f32 %v39, %v164
  %v174 = vld [vmem:[#allocation2 + $0x1] sm:$0xff]
  %v175 = vld [vmem:[#allocation2 + $0x9] sm:$0xff]
  %v176 = vld [vmem:[#allocation2 + $0x11] sm:$0xff]
  %v177 = vld [vmem:[#allocation2 + $0x19] sm:$0xff]
  %v178 = vld [vmem:[#allocation2 + $0x21] sm:$0x3]
  %v179 = vpack.c.bf16 %v175, %v174
  %v180 = vpack.c.bf16 %v177, %v176
  %v181 = vpack.c.bf16 %v178, %v178
  %s182 = scalar_lea.vmem %s1, 64
  %v183 = vld [vmem:[%s182] sm:$0xf]
  %v184 = vld [vmem:[%s182 + $0x4] sm:$0xf]
  %v185 = vld [vmem:[%s182 + $0x8] sm:$0xf]
  %v186 = vld [vmem:[%s182 + $0xc] sm:$0xf]
  %v187 = vld [vmem:[%s182 + $0x10] sm:$0xf]
  %v188 = vld [vmem:[%s182 + $0x14] sm:$0xf]
  %v189 = vld [vmem:[%s182 + $0x18] sm:$0xf]
  %v190 = vld [vmem:[%s182 + $0x1c] sm:$0xf]
  %v191 = vld [vmem:[%s182 + $0x20] sm:$0xf]
  %v192 = vld [vmem:[%s182 + $0x24] sm:$0xf]
  %v193 = vld [vmem:[%s182 + $0x28] sm:$0xf]
  %v194 = vld [vmem:[%s182 + $0x2c] sm:$0xf]
  %v195 = vld [vmem:[%s182 + $0x30] sm:$0xf]
  %v196 = vld [vmem:[%s182 + $0x34] sm:$0xf]
  %v197 = vld [vmem:[%s182 + $0x38] sm:$0xf]
  %v198 = vld [vmem:[%s182 + $0x3c] sm:$0xf]
  %v215 = vunpack.c.l.b16 %v183
  %v216 = vunpack.c.l.b16 %v184
  %v217 = vunpack.c.l.b16 %v185
  %v218 = vunpack.c.l.b16 %v186
  %v219 = vunpack.c.l.b16 %v187
  %v220 = vunpack.c.l.b16 %v188
  %v221 = vunpack.c.l.b16 %v189
  %v222 = vunpack.c.l.b16 %v190
  %v223 = vunpack.c.l.b16 %v191
  %v224 = vunpack.c.l.b16 %v192
  %v225 = vunpack.c.l.b16 %v193
  %v226 = vunpack.c.l.b16 %v194
  %v227 = vunpack.c.l.b16 %v195
  %v228 = vunpack.c.l.b16 %v196
  %v229 = vunpack.c.l.b16 %v197
  %v230 = vunpack.c.l.b16 %v198
  %v231 = vpack.c.b16 %v216, %v215
  %v232 = vpack.c.b16 %v218, %v217
  %v233 = vpack.c.b16 %v220, %v219
  %v234 = vpack.c.b16 %v222, %v221
  %v235 = vpack.c.b16 %v224, %v223
  %v236 = vpack.c.b16 %v226, %v225
  %v237 = vpack.c.b16 %v228, %v227
  %v238 = vpack.c.b16 %v230, %v229
  %247 = vmatprep.subr.bf16.mxu0 0
  %248 = vmatpush1.bf16.msra.mxu0 %v231
  %249 = vmatprep.subr.bf16.mxu0 0
  %250 = vmatpush1.bf16.msra.mxu0 %v232
  %251 = vmatprep.subr.bf16.mxu0 0
  %252 = vmatpush1.bf16.msra.mxu0 %v233
  %253 = vmatprep.subr.bf16.mxu0 0
  %254 = vmatpush1.bf16.msra.mxu0 %v234
  %255 = vmatprep.subr.bf16.mxu0 0
  %256 = vmatpush1.bf16.msra.mxu0 %v235
  %257 = vmatprep.subr.bf16.mxu0 0
  %258 = vmatpush1.bf16.msra.mxu0 %v236
  %259 = vmatprep.subr.bf16.mxu0 0
  %260 = vmatpush1.bf16.msra.mxu0 %v237
  %261 = vmatprep.subr.bf16.mxu0 0
  %262 = vmatpush1.bf16.msra.mxu0 %v238
  %263 = vmatprep.subr.bf16.mxu0 0
  %264 = vmatpush1.bf16.msra.mxu0 0
  %265 = vmatprep.subr.bf16.mxu0 0
  %266 = vmatpush1.bf16.msra.mxu0 0
  %267 = vmatprep.subr.bf16.mxu0 0
  %268 = vmatpush1.bf16.msra.mxu0 0
  %269 = vmatprep.subr.bf16.mxu0 0
  %270 = vmatpush1.bf16.msra.mxu0 0
  %271 = vmatprep.subr.bf16.mxu0 0
  %272 = vmatpush1.bf16.msra.mxu0 0
  %273 = vmatprep.subr.bf16.mxu0 0
  %274 = vmatpush1.bf16.msra.mxu0 0
  %275 = vmatprep.subr.bf16.mxu0 0
  %276 = vmatpush1.bf16.msra.mxu0 0
  %277 = vmatprep.subr.bf16.mxu0 0
  %278 = vmatpush1.bf16.msra.mxu0 0
  %279 = vmatprep.mubr.bf16.mxu0 0
  %280 = vmatmul.mubr.bf16.gmra.mrb[0].mxu0 %v179
  %v281 = vpop.f32.mrb[0].mxu0
  %v282 = vadd.f32 0.0, %v281
  %v283 = vpop.f32.mrb[0].mxu0
  %v284 = vpop.f32.mrb[0].mxu0
  %v285 = vadd.f32 0.0, %v284
  %v286 = vpop.f32.mrb[0].mxu0
  %287 = vmatprep.mubr.bf16.mxu0 0
  %288 = vmatmul.mubr.bf16.gmra.mrb[0].mxu0 %v180
  %v289 = vpop.f32.mrb[0].mxu0
  %v290 = vadd.f32 0.0, %v289
  %v291 = vpop.f32.mrb[0].mxu0
  %v292 = vpop.f32.mrb[0].mxu0
  %v293 = vadd.f32 0.0, %v292
  %v294 = vpop.f32.mrb[0].mxu0
  %295 = vmatprep.mubr.bf16.mxu0 0
  %296 = vmatmul.mubr.bf16.gmra.mrb[0].mxu0 %v181
  %v297 = vpop.f32.mrb[0].mxu0
  %v298 = vadd.f32 0.0, %v297
  %v299 = vpop.f32.mrb[0].mxu0
  %v300 = vpop.f32.mrb[0].mxu0
  %v301 = vpop.f32.mrb[0].mxu0
  %302 = vdwg.mxu0
  %v303 = vadd.f32 %v169, %v282
  %v304 = vadd.f32 %v170, %v285
  %v305 = vadd.f32 %v171, %v290
  %v306 = vadd.f32 %v172, %v293
  %v307 = vadd.f32 %v173, %v298
  %v308 = vld [vmem:[#allocation2 + $0x2] sm:$0xff]
  %v309 = vld [vmem:[#allocation2 + $0xa] sm:$0xff]
  %v310 = vld [vmem:[#allocation2 + $0x12] sm:$0xff]
  %v311 = vld [vmem:[#allocation2 + $0x1a] sm:$0xff]
  %v312 = vld [vmem:[#allocation2 + $0x22] sm:$0x3]
  %v313 = vpack.c.bf16 %v309, %v308
  %v314 = vpack.c.bf16 %v311, %v310
  %v315 = vpack.c.bf16 %v312, %v312
  %s316 = scalar_lea.vmem %s1, 128
  %v317 = vld [vmem:[%s316] sm:$0xf]
  %v318 = vld [vmem:[%s316 + $0x4] sm:$0xf]
  %v319 = vld [vmem:[%s316 + $0x8] sm:$0xf]
  %v320 = vld [vmem:[%s316 + $0xc] sm:$0xf]
  %v321 = vld [vmem:[%s316 + $0x10] sm:$0xf]
  %v322 = vld [vmem:[%s316 + $0x14] sm:$0xf]
  %v323 = vld [vmem:[%s316 + $0x18] sm:$0xf]
  %v324 = vld [vmem:[%s316 + $0x1c] sm:$0xf]
  %v325 = vld [vmem:[%s316 + $0x20] sm:$0xf]
  %v326 = vld [vmem:[%s316 + $0x24] sm:$0xf]
  %v327 = vld [vmem:[%s316 + $0x28] sm:$0xf]
  %v328 = vld [vmem:[%s316 + $0x2c] sm:$0xf]
  %v329 = vld [vmem:[%s316 + $0x30] sm:$0xf]
  %v330 = vld [vmem:[%s316 + $0x34] sm:$0xf]
  %v331 = vld [vmem:[%s316 + $0x38] sm:$0xf]
  %v332 = vld [vmem:[%s316 + $0x3c] sm:$0xf]
  %v349 = vunpack.c.l.b16 %v317
  %v350 = vunpack.c.l.b16 %v318
  %v351 = vunpack.c.l.b16 %v319
  %v352 = vunpack.c.l.b16 %v320
  %v353 = vunpack.c.l.b16 %v321
  %v354 = vunpack.c.l.b16 %v322
  %v355 = vunpack.c.l.b16 %v323
  %v356 = vunpack.c.l.b16 %v324
  %v357 = vunpack.c.l.b16 %v325
  %v358 = vunpack.c.l.b16 %v326
  %v359 = vunpack.c.l.b16 %v327
  %v360 = vunpack.c.l.b16 %v328
  %v361 = vunpack.c.l.b16 %v329
  %v362 = vunpack.c.l.b16 %v330
  %v363 = vunpack.c.l.b16 %v331
  %v364 = vunpack.c.l.b16 %v332
  %v365 = vpack.c.b16 %v350, %v349
  %v366 = vpack.c.b16 %v352, %v351
  %v367 = vpack.c.b16 %v354, %v353
  %v368 = vpack.c.b16 %v356, %v355
  %v369 = vpack.c.b16 %v358, %v357
  %v370 = vpack.c.b16 %v360, %v359
  %v371 = vpack.c.b16 %v362, %v361
  %v372 = vpack.c.b16 %v364, %v363
  %381 = vmatprep.subr.bf16.mxu0 0
  %382 = vmatpush1.bf16.msra.mxu0 %v365
  %383 = vmatprep.subr.bf16.mxu0 0
  %384 = vmatpush1.bf16.msra.mxu0 %v366
  %385 = vmatprep.subr.bf16.mxu0 0
  %386 = vmatpush1.bf16.msra.mxu0 %v367
  %387 = vmatprep.subr.bf16.mxu0 0
  %388 = vmatpush1.bf16.msra.mxu0 %v368
  %389 = vmatprep.subr.bf16.mxu0 0
  %390 = vmatpush1.bf16.msra.mxu0 %v369
  %391 = vmatprep.subr.bf16.mxu0 0
  %392 = vmatpush1.bf16.msra.mxu0 %v370
  %393 = vmatprep.subr.bf16.mxu0 0
  %394 = vmatpush1.bf16.msra.mxu0 %v371
  %395 = vmatprep.subr.bf16.mxu0 0
  %396 = vmatpush1.bf16.msra.mxu0 %v372
  %397 = vmatprep.subr.bf16.mxu0 0
  %398 = vmatpush1.bf16.msra.mxu0 0
  %399 = vmatprep.subr.bf16.mxu0 0
  %400 = vmatpush1.bf16.msra.mxu0 0
  %401 = vmatprep.subr.bf16.mxu0 0
  %402 = vmatpush1.bf16.msra.mxu0 0
  %403 = vmatprep.subr.bf16.mxu0 0
  %404 = vmatpush1.bf16.msra.mxu0 0
  %405 = vmatprep.subr.bf16.mxu0 0
  %406 = vmatpush1.bf16.msra.mxu0 0
  %407 = vmatprep.subr.bf16.mxu0 0
  %408 = vmatpush1.bf16.msra.mxu0 0
  %409 = vmatprep.subr.bf16.mxu0 0
  %410 = vmatpush1.bf16.msra.mxu0 0
  %411 = vmatprep.subr.bf16.mxu0 0
  %412 = vmatpush1.bf16.msra.mxu0 0
  %413 = vmatprep.mubr.bf16.mxu0 0
  %414 = vmatmul.mubr.bf16.gmra.mrb[0].mxu0 %v313
  %v415 = vpop.f32.mrb[0].mxu0
  %v416 = vadd.f32 0.0, %v415
  %v417 = vpop.f32.mrb[0].mxu0
  %v418 = vpop.f32.mrb[0].mxu0
  %v419 = vadd.f32 0.0, %v418
  %v420 = vpop.f32.mrb[0].mxu0
  %421 = vmatprep.mubr.bf16.mxu0 0
  %422 = vmatmul.mubr.bf16.gmra.mrb[0].mxu0 %v314
  %v423 = vpop.f32.mrb[0].mxu0
  %v424 = vadd.f32 0.0, %v423
  %v425 = vpop.f32.mrb[0].mxu0
  %v426 = vpop.f32.mrb[0].mxu0
  %v427 = vadd.f32 0.0, %v426
  %v428 = vpop.f32.mrb[0].mxu0
  %429 = vmatprep.mubr.bf16.mxu0 0
  %430 = vmatmul.mubr.bf16.gmra.mrb[0].mxu0 %v315
  %v431 = vpop.f32.mrb[0].mxu0
  %v432 = vadd.f32 0.0, %v431
  %v433 = vpop.f32.mrb[0].mxu0
  %v434 = vpop.f32.mrb[0].mxu0
  %v435 = vpop.f32.mrb[0].mxu0
  %436 = vdwg.mxu0
  %v437 = vadd.f32 %v303, %v416
  %v438 = vadd.f32 %v304, %v419
  %v439 = vadd.f32 %v305, %v424
  %v440 = vadd.f32 %v306, %v427
  %v441 = vadd.f32 %v307, %v432
  %v442 = vlaneseq
  %v443 = vshrl.u32 %v442, 7
  %v444 = vadd.s32 %v443, 8
  %v445 = vadd.s32 %v443, 16
  %v446 = vadd.s32 %v443, 24
  %v447 = vadd.s32 %v443, 32
  %vm448 = vcmp.lt.s32.totalorder %v443, 0
  %v449 = vsub.s32 0, %v443
  %v450 = vsel %vm448, %v449, %v443
  %v451 = vmul.u32.u64.compose %v450, 3817748708
  %v452 = vextract.low.u32 %v451
  %v453 = vextract.high.u32 %v451
  %v454 = vshrl.u32 %v453, 4
  %v455 = vmul.u32 %v454, 18
  %v456 = vsub.s32 %v450, %v455
  %v457 = vsub.s32 0, %v456
  %v458 = vsel %vm448, %v457, %v456
  %vm459 = vcmp.lt.s32.totalorder %v444, 0
  %v460 = vsub.s32 0, %v444
  %v461 = vsel %vm459, %v460, %v444
  %v462 = vmul.u32.u64.compose %v461, 3817748708
  %v463 = vextract.low.u32 %v462
  %v464 = vextract.high.u32 %v462
  %v465 = vshrl.u32 %v464, 4
  %v466 = vmul.u32 %v465, 18
  %v467 = vsub.s32 %v461, %v466
  %v468 = vsub.s32 0, %v467
  %v469 = vsel %vm459, %v468, %v467
  %vm470 = vcmp.lt.s32.totalorder %v445, 0
  %v471 = vsub.s32 0, %v445
  %v472 = vsel %vm470, %v471, %v445
  %v473 = vmul.u32.u64.compose %v472, 3817748708
  %v474 = vextract.low.u32 %v473
  %v475 = vextract.high.u32 %v473
  %v476 = vshrl.u32 %v475, 4
  %v477 = vmul.u32 %v476, 18
  %v478 = vsub.s32 %v472, %v477
  %v479 = vsub.s32 0, %v478
  %v480 = vsel %vm470, %v479, %v478
  %vm481 = vcmp.lt.s32.totalorder %v446, 0
  %v482 = vsub.s32 0, %v446
  %v483 = vsel %vm481, %v482, %v446
  %v484 = vmul.u32.u64.compose %v483, 3817748708
  %v485 = vextract.low.u32 %v484
  %v486 = vextract.high.u32 %v484
  %v487 = vshrl.u32 %v486, 4
  %v488 = vmul.u32 %v487, 18
  %v489 = vsub.s32 %v483, %v488
  %v490 = vsub.s32 0, %v489
  %v491 = vsel %vm481, %v490, %v489
  %vm492 = vcmp.lt.s32.totalorder %v447, 0
  %v493 = vsub.s32 0, %v447
  %v494 = vsel %vm492, %v493, %v447
  %v495 = vmul.u32.u64.compose %v494, 3817748708
  %v496 = vextract.low.u32 %v495
  %v497 = vextract.high.u32 %v495
  %v498 = vshrl.u32 %v497, 4
  %v499 = vmul.u32 %v498, 18
  %v500 = vsub.s32 %v494, %v499
  %v501 = vsub.s32 0, %v500
  %v502 = vsel %vm492, %v501, %v500
  %vm503 = vcmp.ne.s32.totalorder %v458, 0
  %vm504 = vcmp.ne.s32.totalorder %v469, 0
  %vm505 = vcmp.ne.s32.totalorder %v480, 0
  %vm506 = vcmp.ne.s32.totalorder %v491, 0
  %vm507 = vcmp.ne.s32.totalorder %v502, 0
  %vm508 = vcmp.lt.s32.totalorder %v458, 0
  %vm509 = vcmp.lt.s32.totalorder %v469, 0
  %vm510 = vcmp.lt.s32.totalorder %v480, 0
  %vm511 = vcmp.lt.s32.totalorder %v491, 0
  %vm512 = vcmp.lt.s32.totalorder %v502, 0
  %vm513 = vmand %vm508, %vm503
  %vm514 = vmand %vm509, %vm504
  %vm515 = vmand %vm510, %vm505
  %vm516 = vmand %vm511, %vm506
  %vm517 = vmand %vm512, %vm507
  %v518 = vadd.s32 %v458, 18
  %v519 = vadd.s32 %v469, 18
  %v520 = vadd.s32 %v480, 18
  %v521 = vadd.s32 %v491, 18
  %v522 = vadd.s32 %v502, 18
  %v523 = vsel %vm513, %v518, %v458
  %v524 = vsel %vm514, %v519, %v469
  %v525 = vsel %vm515, %v520, %v480
  %v526 = vsel %vm516, %v521, %v491
  %v527 = vsel %vm517, %v522, %v502
  %vm528 = vcmp.lt.s32.totalorder %v523, 16
  %vm529 = vcmp.lt.s32.totalorder %v524, 16
  %vm530 = vcmp.lt.s32.totalorder %v525, 16
  %vm531 = vcmp.lt.s32.totalorder %v526, 16
  %vm532 = vcmp.lt.s32.totalorder %v527, 16
  %v533 = vmax.f32 %v437, 0.0
  %v534 = vmax.f32 %v438, 0.0
  %v535 = vmax.f32 %v439, 0.0
  %v536 = vmax.f32 %v440, 0.0
  %v537 = vmax.f32 %v441, 0.0
  %v538 = vsel %vm528, 1, 0
  %v539 = vsel %vm529, 1, 0
  %v540 = vsel %vm530, 1, 0
  %v541 = vsel %vm531, 1, 0
  %v542 = vsel %vm532, 1, 0
  %vm543 = vcmp.eq.s32.totalorder %v538, 1
  %vm544 = vcmp.eq.s32.totalorder %v539, 1
  %vm545 = vcmp.eq.s32.totalorder %v540, 1
  %vm546 = vcmp.eq.s32.totalorder %v541, 1
  %vm547 = vcmp.eq.s32.totalorder %v542, 1
  %v548 = vsel %vm543, %v533, 0.0
  %v549 = vsel %vm544, %v534, 0.0
  %v550 = vsel %vm545, %v535, 0.0
  %v551 = vsel %vm546, %v536, 0.0
  %v552 = vsel %vm547, %v537, 0.0
  %553 = vst [vmem:[#allocation3] sm:$0x1] 0.0
  %554 = vst [vmem:[#allocation3 + $0x23] sm:$0x1] 0.0
  %555 = vst [vmem:[#allocation3 + $0x1] sm:$0xff] %v548
  %556 = vst [vmem:[#allocation3 + $0x9] sm:$0xff] %v549
  %557 = vst [vmem:[#allocation3 + $0x11] sm:$0xff] %v550
  %558 = vst [vmem:[#allocation3 + $0x19] sm:$0xff] %v551
  %559 = vst [vmem:[#allocation3 + $0x21] sm:$0x3] %v552
  %v560 = vld [vmem:[%s4] sm:$0x1]
  %v562 = vlaneseq
  %v563 = vshrl.u32 %v562, 7
  %v564 = vsub.s32 0, %v563
  %v565 = vrot.slane %v560, %v564
  %v567 = vld [vmem:[#allocation3] sm:$0xff]
  %v568 = vld [vmem:[#allocation3 + $0x8] sm:$0xff]
  %v569 = vld [vmem:[#allocation3 + $0x10] sm:$0xff]
  %v570 = vld [vmem:[#allocation3 + $0x18] sm:$0xff]
  %v571 = vld [vmem:[#allocation3 + $0x20] sm:$0x3]
  %v572 = vpack.c.bf16 %v568, %v567
  %v573 = vpack.c.bf16 %v570, %v569
  %v574 = vpack.c.bf16 %v571, %v571
  %v575 = vld [vmem:[%s3] sm:$0xf]
  %v576 = vld [vmem:[%s3 + $0x4] sm:$0xf]
  %v577 = vld [vmem:[%s3 + $0x8] sm:$0xf]
  %v578 = vld [vmem:[%s3 + $0xc] sm:$0xf]
  %v579 = vld [vmem:[%s3 + $0x10] sm:$0xf]
  %v580 = vld [vmem:[%s3 + $0x14] sm:$0xf]
  %v581 = vld [vmem:[%s3 + $0x18] sm:$0xf]
  %v582 = vld [vmem:[%s3 + $0x1c] sm:$0xf]
  %v583 = vld [vmem:[%s3 + $0x20] sm:$0xf]
  %v584 = vld [vmem:[%s3 + $0x24] sm:$0xf]
  %v585 = vld [vmem:[%s3 + $0x28] sm:$0xf]
  %v586 = vld [vmem:[%s3 + $0x2c] sm:$0xf]
  %v587 = vld [vmem:[%s3 + $0x30] sm:$0xf]
  %v588 = vld [vmem:[%s3 + $0x34] sm:$0xf]
  %v589 = vld [vmem:[%s3 + $0x38] sm:$0xf]
  %v590 = vld [vmem:[%s3 + $0x3c] sm:$0xf]
  %v607 = vunpack.c.l.b16 %v575
  %v608 = vunpack.c.l.b16 %v576
  %v609 = vunpack.c.l.b16 %v577
  %v610 = vunpack.c.l.b16 %v578
  %v611 = vunpack.c.l.b16 %v579
  %v612 = vunpack.c.l.b16 %v580
  %v613 = vunpack.c.l.b16 %v581
  %v614 = vunpack.c.l.b16 %v582
  %v615 = vunpack.c.l.b16 %v583
  %v616 = vunpack.c.l.b16 %v584
  %v617 = vunpack.c.l.b16 %v585
  %v618 = vunpack.c.l.b16 %v586
  %v619 = vunpack.c.l.b16 %v587
  %v620 = vunpack.c.l.b16 %v588
  %v621 = vunpack.c.l.b16 %v589
  %v622 = vunpack.c.l.b16 %v590
  %v623 = vpack.c.b16 %v608, %v607
  %v624 = vpack.c.b16 %v610, %v609
  %v625 = vpack.c.b16 %v612, %v611
  %v626 = vpack.c.b16 %v614, %v613
  %v627 = vpack.c.b16 %v616, %v615
  %v628 = vpack.c.b16 %v618, %v617
  %v629 = vpack.c.b16 %v620, %v619
  %v630 = vpack.c.b16 %v622, %v621
  %639 = vmatprep.subr.bf16.mxu0 0
  %640 = vmatpush1.bf16.msra.mxu0 %v623
  %641 = vmatprep.subr.bf16.mxu0 0
  %642 = vmatpush1.bf16.msra.mxu0 %v624
  %643 = vmatprep.subr.bf16.mxu0 0
  %644 = vmatpush1.bf16.msra.mxu0 %v625
  %645 = vmatprep.subr.bf16.mxu0 0
  %646 = vmatpush1.bf16.msra.mxu0 %v626
  %647 = vmatprep.subr.bf16.mxu0 0
  %648 = vmatpush1.bf16.msra.mxu0 %v627
  %649 = vmatprep.subr.bf16.mxu0 0
  %650 = vmatpush1.bf16.msra.mxu0 %v628
  %651 = vmatprep.subr.bf16.mxu0 0
  %652 = vmatpush1.bf16.msra.mxu0 %v629
  %653 = vmatprep.subr.bf16.mxu0 0
  %654 = vmatpush1.bf16.msra.mxu0 %v630
  %655 = vmatprep.subr.bf16.mxu0 0
  %656 = vmatpush1.bf16.msra.mxu0 0
  %657 = vmatprep.subr.bf16.mxu0 0
  %658 = vmatpush1.bf16.msra.mxu0 0
  %659 = vmatprep.subr.bf16.mxu0 0
  %660 = vmatpush1.bf16.msra.mxu0 0
  %661 = vmatprep.subr.bf16.mxu0 0
  %662 = vmatpush1.bf16.msra.mxu0 0
  %663 = vmatprep.subr.bf16.mxu0 0
  %664 = vmatpush1.bf16.msra.mxu0 0
  %665 = vmatprep.subr.bf16.mxu0 0
  %666 = vmatpush1.bf16.msra.mxu0 0
  %667 = vmatprep.subr.bf16.mxu0 0
  %668 = vmatpush1.bf16.msra.mxu0 0
  %669 = vmatprep.subr.bf16.mxu0 0
  %670 = vmatpush1.bf16.msra.mxu0 0
  %671 = vmatprep.mubr.bf16.mxu0 0
  %672 = vmatmul.mubr.bf16.gmra.mrb[0].mxu0 %v572
  %v673 = vpop.f32.mrb[0].mxu0
  %v674 = vadd.f32 0.0, %v673
  %v675 = vpop.f32.mrb[0].mxu0
  %v676 = vpop.f32.mrb[0].mxu0
  %v677 = vadd.f32 0.0, %v676
  %v678 = vpop.f32.mrb[0].mxu0
  %679 = vmatprep.mubr.bf16.mxu0 0
  %680 = vmatmul.mubr.bf16.gmra.mrb[0].mxu0 %v573
  %v681 = vpop.f32.mrb[0].mxu0
  %v682 = vadd.f32 0.0, %v681
  %v683 = vpop.f32.mrb[0].mxu0
  %v684 = vpop.f32.mrb[0].mxu0
  %v685 = vadd.f32 0.0, %v684
  %v686 = vpop.f32.mrb[0].mxu0
  %687 = vmatprep.mubr.bf16.mxu0 0
  %688 = vmatmul.mubr.bf16.gmra.mrb[0].mxu0 %v574
  %v689 = vpop.f32.mrb[0].mxu0
  %v690 = vadd.f32 0.0, %v689
  %v691 = vpop.f32.mrb[0].mxu0
  %v692 = vpop.f32.mrb[0].mxu0
  %v693 = vpop.f32.mrb[0].mxu0
  %694 = vdwg.mxu0
  %v695 = vadd.f32 %v565, %v674
  %v696 = vadd.f32 %v565, %v677
  %v697 = vadd.f32 %v565, %v682
  %v698 = vadd.f32 %v565, %v685
  %v699 = vadd.f32 %v565, %v690
  %v700 = vld [vmem:[#allocation3 + $0x1] sm:$0xff]
  %v701 = vld [vmem:[#allocation3 + $0x9] sm:$0xff]
  %v702 = vld [vmem:[#allocation3 + $0x11] sm:$0xff]
  %v703 = vld [vmem:[#allocation3 + $0x19] sm:$0xff]
  %v704 = vld [vmem:[#allocation3 + $0x21] sm:$0x3]
  %v705 = vpack.c.bf16 %v701, %v700
  %v706 = vpack.c.bf16 %v703, %v702
  %v707 = vpack.c.bf16 %v704, %v704
  %s708 = scalar_lea.vmem %s3, 64
  %v709 = vld [vmem:[%s708] sm:$0xf]
  %v710 = vld [vmem:[%s708 + $0x4] sm:$0xf]
  %v711 = vld [vmem:[%s708 + $0x8] sm:$0xf]
  %v712 = vld [vmem:[%s708 + $0xc] sm:$0xf]
  %v713 = vld [vmem:[%s708 + $0x10] sm:$0xf]
  %v714 = vld [vmem:[%s708 + $0x14] sm:$0xf]
  %v715 = vld [vmem:[%s708 + $0x18] sm:$0xf]
  %v716 = vld [vmem:[%s708 + $0x1c] sm:$0xf]
  %v717 = vld [vmem:[%s708 + $0x20] sm:$0xf]
  %v718 = vld [vmem:[%s708 + $0x24] sm:$0xf]
  %v719 = vld [vmem:[%s708 + $0x28] sm:$0xf]
  %v720 = vld [vmem:[%s708 + $0x2c] sm:$0xf]
  %v721 = vld [vmem:[%s708 + $0x30] sm:$0xf]
  %v722 = vld [vmem:[%s708 + $0x34] sm:$0xf]
  %v723 = vld [vmem:[%s708 + $0x38] sm:$0xf]
  %v724 = vld [vmem:[%s708 + $0x3c] sm:$0xf]
  %v741 = vunpack.c.l.b16 %v709
  %v742 = vunpack.c.l.b16 %v710
  %v743 = vunpack.c.l.b16 %v711
  %v744 = vunpack.c.l.b16 %v712
  %v745 = vunpack.c.l.b16 %v713
  %v746 = vunpack.c.l.b16 %v714
  %v747 = vunpack.c.l.b16 %v715
  %v748 = vunpack.c.l.b16 %v716
  %v749 = vunpack.c.l.b16 %v717
  %v750 = vunpack.c.l.b16 %v718
  %v751 = vunpack.c.l.b16 %v719
  %v752 = vunpack.c.l.b16 %v720
  %v753 = vunpack.c.l.b16 %v721
  %v754 = vunpack.c.l.b16 %v722
  %v755 = vunpack.c.l.b16 %v723
  %v756 = vunpack.c.l.b16 %v724
  %v757 = vpack.c.b16 %v742, %v741
  %v758 = vpack.c.b16 %v744, %v743
  %v759 = vpack.c.b16 %v746, %v745
  %v760 = vpack.c.b16 %v748, %v747
  %v761 = vpack.c.b16 %v750, %v749
  %v762 = vpack.c.b16 %v752, %v751
  %v763 = vpack.c.b16 %v754, %v753
  %v764 = vpack.c.b16 %v756, %v755
  %773 = vmatprep.subr.bf16.mxu0 0
  %774 = vmatpush1.bf16.msra.mxu0 %v757
  %775 = vmatprep.subr.bf16.mxu0 0
  %776 = vmatpush1.bf16.msra.mxu0 %v758
  %777 = vmatprep.subr.bf16.mxu0 0
  %778 = vmatpush1.bf16.msra.mxu0 %v759
  %779 = vmatprep.subr.bf16.mxu0 0
  %780 = vmatpush1.bf16.msra.mxu0 %v760
  %781 = vmatprep.subr.bf16.mxu0 0
  %782 = vmatpush1.bf16.msra.mxu0 %v761
  %783 = vmatprep.subr.bf16.mxu0 0
  %784 = vmatpush1.bf16.msra.mxu0 %v762
  %785 = vmatprep.subr.bf16.mxu0 0
  %786 = vmatpush1.bf16.msra.mxu0 %v763
  %787 = vmatprep.subr.bf16.mxu0 0
  %788 = vmatpush1.bf16.msra.mxu0 %v764
  %789 = vmatprep.subr.bf16.mxu0 0
  %790 = vmatpush1.bf16.msra.mxu0 0
  %791 = vmatprep.subr.bf16.mxu0 0
  %792 = vmatpush1.bf16.msra.mxu0 0
  %793 = vmatprep.subr.bf16.mxu0 0
  %794 = vmatpush1.bf16.msra.mxu0 0
  %795 = vmatprep.subr.bf16.mxu0 0
  %796 = vmatpush1.bf16.msra.mxu0 0
  %797 = vmatprep.subr.bf16.mxu0 0
  %798 = vmatpush1.bf16.msra.mxu0 0
  %799 = vmatprep.subr.bf16.mxu0 0
  %800 = vmatpush1.bf16.msra.mxu0 0
  %801 = vmatprep.subr.bf16.mxu0 0
  %802 = vmatpush1.bf16.msra.mxu0 0
  %803 = vmatprep.subr.bf16.mxu0 0
  %804 = vmatpush1.bf16.msra.mxu0 0
  %805 = vmatprep.mubr.bf16.mxu0 0
  %806 = vmatmul.mubr.bf16.gmra.mrb[0].mxu0 %v705
  %v807 = vpop.f32.mrb[0].mxu0
  %v808 = vadd.f32 0.0, %v807
  %v809 = vpop.f32.mrb[0].mxu0
  %v810 = vpop.f32.mrb[0].mxu0
  %v811 = vadd.f32 0.0, %v810
  %v812 = vpop.f32.mrb[0].mxu0
  %813 = vmatprep.mubr.bf16.mxu0 0
  %814 = vmatmul.mubr.bf16.gmra.mrb[0].mxu0 %v706
  %v815 = vpop.f32.mrb[0].mxu0
  %v816 = vadd.f32 0.0, %v815
  %v817 = vpop.f32.mrb[0].mxu0
  %v818 = vpop.f32.mrb[0].mxu0
  %v819 = vadd.f32 0.0, %v818
  %v820 = vpop.f32.mrb[0].mxu0
  %821 = vmatprep.mubr.bf16.mxu0 0
  %822 = vmatmul.mubr.bf16.gmra.mrb[0].mxu0 %v707
  %v823 = vpop.f32.mrb[0].mxu0
  %v824 = vadd.f32 0.0, %v823
  %v825 = vpop.f32.mrb[0].mxu0
  %v826 = vpop.f32.mrb[0].mxu0
  %v827 = vpop.f32.mrb[0].mxu0
  %828 = vdwg.mxu0
  %v829 = vadd.f32 %v695, %v808
  %v830 = vadd.f32 %v696, %v811
  %v831 = vadd.f32 %v697, %v816
  %v832 = vadd.f32 %v698, %v819
  %v833 = vadd.f32 %v699, %v824
  %v834 = vld [vmem:[#allocation3 + $0x2] sm:$0xff]
  %v835 = vld [vmem:[#allocation3 + $0xa] sm:$0xff]
  %v836 = vld [vmem:[#allocation3 + $0x12] sm:$0xff]
  %v837 = vld [vmem:[#allocation3 + $0x1a] sm:$0xff]
  %v838 = vld [vmem:[#allocation3 + $0x22] sm:$0x3]
  %v839 = vpack.c.bf16 %v835, %v834
  %v840 = vpack.c.bf16 %v837, %v836
  %v841 = vpack.c.bf16 %v838, %v838
  %s842 = scalar_lea.vmem %s3, 128
  %v843 = vld [vmem:[%s842] sm:$0xf]
  %v844 = vld [vmem:[%s842 + $0x4] sm:$0xf]
  %v845 = vld [vmem:[%s842 + $0x8] sm:$0xf]
  %v846 = vld [vmem:[%s842 + $0xc] sm:$0xf]
  %v847 = vld [vmem:[%s842 + $0x10] sm:$0xf]
  %v848 = vld [vmem:[%s842 + $0x14] sm:$0xf]
  %v849 = vld [vmem:[%s842 + $0x18] sm:$0xf]
  %v850 = vld [vmem:[%s842 + $0x1c] sm:$0xf]
  %v851 = vld [vmem:[%s842 + $0x20] sm:$0xf]
  %v852 = vld [vmem:[%s842 + $0x24] sm:$0xf]
  %v853 = vld [vmem:[%s842 + $0x28] sm:$0xf]
  %v854 = vld [vmem:[%s842 + $0x2c] sm:$0xf]
  %v855 = vld [vmem:[%s842 + $0x30] sm:$0xf]
  %v856 = vld [vmem:[%s842 + $0x34] sm:$0xf]
  %v857 = vld [vmem:[%s842 + $0x38] sm:$0xf]
  %v858 = vld [vmem:[%s842 + $0x3c] sm:$0xf]
  %v875 = vunpack.c.l.b16 %v843
  %v876 = vunpack.c.l.b16 %v844
  %v877 = vunpack.c.l.b16 %v845
  %v878 = vunpack.c.l.b16 %v846
  %v879 = vunpack.c.l.b16 %v847
  %v880 = vunpack.c.l.b16 %v848
  %v881 = vunpack.c.l.b16 %v849
  %v882 = vunpack.c.l.b16 %v850
  %v883 = vunpack.c.l.b16 %v851
  %v884 = vunpack.c.l.b16 %v852
  %v885 = vunpack.c.l.b16 %v853
  %v886 = vunpack.c.l.b16 %v854
  %v887 = vunpack.c.l.b16 %v855
  %v888 = vunpack.c.l.b16 %v856
  %v889 = vunpack.c.l.b16 %v857
  %v890 = vunpack.c.l.b16 %v858
  %v891 = vpack.c.b16 %v876, %v875
  %v892 = vpack.c.b16 %v878, %v877
  %v893 = vpack.c.b16 %v880, %v879
  %v894 = vpack.c.b16 %v882, %v881
  %v895 = vpack.c.b16 %v884, %v883
  %v896 = vpack.c.b16 %v886, %v885
  %v897 = vpack.c.b16 %v888, %v887
  %v898 = vpack.c.b16 %v890, %v889
  %907 = vmatprep.subr.bf16.mxu0 0
  %908 = vmatpush1.bf16.msra.mxu0 %v891
  %909 = vmatprep.subr.bf16.mxu0 0
  %910 = vmatpush1.bf16.msra.mxu0 %v892
  %911 = vmatprep.subr.bf16.mxu0 0
  %912 = vmatpush1.bf16.msra.mxu0 %v893
  %913 = vmatprep.subr.bf16.mxu0 0
  %914 = vmatpush1.bf16.msra.mxu0 %v894
  %915 = vmatprep.subr.bf16.mxu0 0
  %916 = vmatpush1.bf16.msra.mxu0 %v895
  %917 = vmatprep.subr.bf16.mxu0 0
  %918 = vmatpush1.bf16.msra.mxu0 %v896
  %919 = vmatprep.subr.bf16.mxu0 0
  %920 = vmatpush1.bf16.msra.mxu0 %v897
  %921 = vmatprep.subr.bf16.mxu0 0
  %922 = vmatpush1.bf16.msra.mxu0 %v898
  %923 = vmatprep.subr.bf16.mxu0 0
  %924 = vmatpush1.bf16.msra.mxu0 0
  %925 = vmatprep.subr.bf16.mxu0 0
  %926 = vmatpush1.bf16.msra.mxu0 0
  %927 = vmatprep.subr.bf16.mxu0 0
  %928 = vmatpush1.bf16.msra.mxu0 0
  %929 = vmatprep.subr.bf16.mxu0 0
  %930 = vmatpush1.bf16.msra.mxu0 0
  %931 = vmatprep.subr.bf16.mxu0 0
  %932 = vmatpush1.bf16.msra.mxu0 0
  %933 = vmatprep.subr.bf16.mxu0 0
  %934 = vmatpush1.bf16.msra.mxu0 0
  %935 = vmatprep.subr.bf16.mxu0 0
  %936 = vmatpush1.bf16.msra.mxu0 0
  %937 = vmatprep.subr.bf16.mxu0 0
  %938 = vmatpush1.bf16.msra.mxu0 0
  %939 = vmatprep.mubr.bf16.mxu0 0
  %940 = vmatmul.mubr.bf16.gmra.mrb[0].mxu0 %v839
  %v941 = vpop.f32.mrb[0].mxu0
  %v942 = vadd.f32 0.0, %v941
  %v943 = vpop.f32.mrb[0].mxu0
  %v944 = vpop.f32.mrb[0].mxu0
  %v945 = vadd.f32 0.0, %v944
  %v946 = vpop.f32.mrb[0].mxu0
  %947 = vmatprep.mubr.bf16.mxu0 0
  %948 = vmatmul.mubr.bf16.gmra.mrb[0].mxu0 %v840
  %v949 = vpop.f32.mrb[0].mxu0
  %v950 = vadd.f32 0.0, %v949
  %v951 = vpop.f32.mrb[0].mxu0
  %v952 = vpop.f32.mrb[0].mxu0
  %v953 = vadd.f32 0.0, %v952
  %v954 = vpop.f32.mrb[0].mxu0
  %955 = vmatprep.mubr.bf16.mxu0 0
  %956 = vmatmul.mubr.bf16.gmra.mrb[0].mxu0 %v841
  %v957 = vpop.f32.mrb[0].mxu0
  %v958 = vadd.f32 0.0, %v957
  %v959 = vpop.f32.mrb[0].mxu0
  %v960 = vpop.f32.mrb[0].mxu0
  %v961 = vpop.f32.mrb[0].mxu0
  %962 = vdwg.mxu0
  %v963 = vadd.f32 %v829, %v942
  %v964 = vadd.f32 %v830, %v945
  %v965 = vadd.f32 %v831, %v950
  %v966 = vadd.f32 %v832, %v953
  %v967 = vadd.f32 %v833, %v958
  %v968 = vld [vmem:[%s0] sm:$0xff]
  %v969 = vld [vmem:[%s0 + $0x8] sm:$0xff]
  %v970 = vadd.f32 %v963, %v968
  %v971 = vadd.f32 %v964, %v969
  %972 = vst [vmem:[%s5] sm:$0xff] %v970
  %973 = vst [vmem:[%s5 + $0x8] sm:$0xff] %v971
  %v974 = vld [vmem:[%s29] sm:$0xff]
  %v975 = vld [vmem:[%s29 + $0x8] sm:$0xff]
  %vm978 = vcmask 1041408
  %v979 = vrot.slane %v974, 6
  %v980 = vrot.slane %v975, 6
  %v981 = vsel %vm978, %v979, %v980
  %v985 = vadd.f32 %v965, %v979
  %v986 = vadd.f32 %v966, %v981
  %v987 = vadd.f32 %v967, %v980
  %s988 = scalar_lea.vmem %s5, 16
  %989 = vst [vmem:[%s988 - $0x2] sm:$0xfc] %v985
  %990 = vst [vmem:[%s988 + $0x6] sm:$0xff] %v986
  %991 = vst [vmem:[%s988 + $0xe] sm:$0x3] %v987
  // Predicated region
  $region22: #{res_block.1} parent=0 // pred_check
    _
  $region23: #{res_block.1} parent=0 // pred_check_branch
    %993 = sbr.rel (0) target = $region25
  $region24: #{res_block.1} parent=0 // pred_region
    _
  $region25: #{res_block.1} parent=0 // pred_fallthru
    _
  // Predicated region
  $region26: #{res_block.1} parent=0 // pred_check
    _
  $region27: #{res_block.1} parent=0 // pred_check_branch
    %995 = sbr.rel (0) target = $region29
  $region28: #{res_block.1} parent=0 // pred_region
    _
  $region29: #{res_block.1} parent=0 // pred_fallthru
    _

</llo_original>
